<compile_context>
chip_gen: v7x
topology: tpu7x:2x2x1
jax: 0.10.0
libtpu: 0.0.40
codegen_flags: <defaults>
</compile_context>

<pallas_src>
import jax
import jax.numpy as jnp
from jax.experimental import pallas as pl
from jax.experimental.pallas import tpu as pltpu

C1 = 0.01 ** 2
C2 = 0.03 ** 2


def _ssim_kernel(x_ref, y_ref, out_ref):
    # x_ref / y_ref / out_ref: (B, H, W) unpadded image planes.
    x = x_ref[...].astype(jnp.float32)
    y = y_ref[...].astype(jnp.float32)

    def shift_sum(a, axis):
        # prev[i] + a[i] + nxt[i] along `axis`, with 1-pixel *reflection*
        # boundary handling (prev[0] = a[1], nxt[n-1] = a[n-2]) — this is
        # exactly the behaviour of ReflectionPad2d(1) + valid 3-tap sum.
        n = a.shape[axis]

        def slc(lo, hi):
            idx = [slice(None)] * a.ndim
            idx[axis] = slice(lo, hi)
            return a[tuple(idx)]

        prev = jnp.concatenate([slc(1, 2), slc(0, n - 1)], axis=axis)
        nxt = jnp.concatenate([slc(1, n), slc(n - 2, n - 1)], axis=axis)
        return prev + a + nxt

    def pool3x3(a):
        # Separable 3x3 box filter: lane (W) pass, then sublane (H) pass,
        # single 1/9 scale applied once at the end (matches nn.AvgPool2d(3, 1)
        # applied to the reflection-padded image).
        return shift_sum(shift_sum(a, 2), 1) * (1.0 / 9.0)

    mu_x = pool3x3(x)
    mu_y = pool3x3(y)
    sigma_x = pool3x3(x * x) - mu_x * mu_x
    sigma_y = pool3x3(y * y) - mu_y * mu_y
    sigma_xy = pool3x3(x * y) - mu_x * mu_y

    ssim_n = (2.0 * mu_x * mu_y + C1) * (2.0 * sigma_xy + C2)
    ssim_d = (mu_x * mu_x + mu_y * mu_y + C1) * (sigma_x + sigma_y + C2)

    # ssim_d >= C1*C2 > 0, so the reciprocal is always well defined.
    val = (1.0 - ssim_n * pl.reciprocal(ssim_d, approx=False)) * 0.5
    out_ref[...] = jnp.clip(val, 0.0, 1.0).astype(out_ref.dtype)


def _pick_block_planes(n_planes, plane_elems, itemsize):
    """Largest divisor of n_planes whose per-input block stays ~<= 2 MiB.

    Keeps (2 inputs + 1 output, double-buffered, plus ~6 f32 intermediates)
    comfortably inside the default scoped-VMEM limit on v5e/v6e/v7x, while
    leaving at least 2 grid steps so both v7x TensorCores get work.
    """
    budget = 2 << 20
    target = max(1, budget // max(1, plane_elems * itemsize))
    if n_planes >= 2:
        target = min(target, n_planes // 2)
    target = max(1, min(target, n_planes))
    best = 1
    for d in range(1, target + 1):
        if n_planes % d == 0:
            best = d
    return best


def ssim_loss(x, y):
    """x, y: (N, C, H, W) float. Returns (N, C, H, W) SSIM loss map."""
    assert x.shape == y.shape and x.ndim == 4
    N, Ch, H, W = x.shape
    assert H >= 2 and W >= 2, "ReflectionPad2d(1) requires H, W >= 2"

    planes = N * Ch
    xf = x.reshape(planes, H, W)   # free reshape (merge of leading dims)
    yf = y.reshape(planes, H, W)

    B = _pick_block_planes(planes, H * W, jnp.dtype(x.dtype).itemsize)
    grid = (planes // B,)

    # TODO(synk): for very large planes (e.g. 1080p) add H-row tiling with a
    # 2-row halo instead of whole-plane blocks, to stay within v7x VMEM.
    out = pl.pallas_call(
        _ssim_kernel,
        out_shape=jax.ShapeDtypeStruct((planes, H, W), x.dtype),
        grid_spec=pltpu.PrefetchScalarGridSpec(
            num_scalar_prefetch=0,
            grid=grid,
            in_specs=[
                pl.BlockSpec((B, H, W), lambda i: (i, 0, 0)),
                pl.BlockSpec((B, H, W), lambda i: (i, 0, 0)),
            ],
            out_specs=pl.BlockSpec((B, H, W), lambda i: (i, 0, 0)),
        ),
        compiler_params=pltpu.CompilerParams(
            dimension_semantics=("parallel",),
        ),
    )(xf, yf)

    return out.reshape(N, Ch, H, W)


def _ssim_ref(x, y):
    """Pure-JAX reference matching the PyTorch module."""
    pad = ((0, 0), (0, 0), (1, 1), (1, 1))
    xp = jnp.pad(x, pad, mode="reflect")
    yp = jnp.pad(y, pad, mode="reflect")

    def pool(a):
        _, _, Hp, Wp = a.shape
        H, W = Hp - 2, Wp - 2
        s = jnp.zeros(a.shape[:2] + (H, W), a.dtype)
        for di in range(3):
            for dj in range(3):
                s = s + a[:, :, di:di + H, dj:dj + W]
        return s / 9.0

    mu_x, mu_y = pool(xp), pool(yp)
    sigma_x = pool(xp * xp) - mu_x ** 2
    sigma_y = pool(yp * yp) - mu_y ** 2
    sigma_xy = pool(xp * yp) - mu_x * mu_y
    n = (2 * mu_x * mu_y + C1) * (2 * sigma_xy + C2)
    d = (mu_x ** 2 + mu_y ** 2 + C1) * (sigma_x + sigma_y + C2)
    return jnp.clip((1 - n / d) / 2, 0.0, 1.0)


if __name__ == "__main__":
    key = jax.random.PRNGKey(0)
    kx, ky = jax.random.split(key)
    N, Ch, H, W = 2, 4, 16, 16
    x = jax.random.uniform(kx, (N, Ch, H, W), dtype=jnp.float32)
    y = jax.random.uniform(ky, (N, Ch, H, W), dtype=jnp.float32)

    out = jax.block_until_ready(ssim_loss(x, y))
    ref = jax.block_until_ready(_ssim_ref(x, y))

    assert out.shape == (N, Ch, H, W)
    assert jnp.allclose(out, ref, atol=1e-5, rtol=1e-5), (
        float(jnp.max(jnp.abs(out - ref)))
    )
    print("KERNEL_OK")
</pallas_src>

<mosaic_0001>
module attributes {stable_mosaic.version = 11 : i64} {
  func.func @_ssim_kernel(%arg0: i32, %arg1: memref<4x16x16xf32, #tpu.memory_space<vmem>>, %arg2: memref<4x16x16xf32, #tpu.memory_space<vmem>>, %arg3: memref<4x16x16xf32, #tpu.memory_space<vmem>>) attributes {dimension_semantics = [#tpu.dimension_semantics<parallel>], iteration_bounds = array<i64: 2>, scalar_prefetch = 0 : i64, scratch_operands = 0 : i64, tpu.core_type = #tpu.core_type<tc>, window_params = [{transform_indices = @transform_0, window_bounds = array<i64: 4, 16, 16>}, {transform_indices = @transform_1, window_bounds = array<i64: 4, 16, 16>}, {transform_indices = @transform_2, window_bounds = array<i64: 4, 16, 16>}]} {
    %c0 = arith.constant 0 : index
    %c0_0 = arith.constant 0 : index
    %c0_1 = arith.constant 0 : index
    %0 = vector.load %arg1[%c0, %c0_0, %c0_1] : memref<4x16x16xf32, #tpu.memory_space<vmem>>, vector<4x16x16xf32>
    %c0_2 = arith.constant 0 : index
    %c0_3 = arith.constant 0 : index
    %c0_4 = arith.constant 0 : index
    %1 = vector.load %arg2[%c0_2, %c0_3, %c0_4] : memref<4x16x16xf32, #tpu.memory_space<vmem>>, vector<4x16x16xf32>
    %2 = vector.extract_strided_slice %0 {offsets = [0, 0, 1], sizes = [4, 16, 1], strides = [1, 1, 1]} : vector<4x16x16xf32> to vector<4x16x1xf32>
    %3 = vector.extract_strided_slice %0 {offsets = [0, 0, 0], sizes = [4, 16, 15], strides = [1, 1, 1]} : vector<4x16x16xf32> to vector<4x16x15xf32>
    %4 = tpu.concatenate %2, %3 in 2 : vector<4x16x1xf32>, vector<4x16x15xf32> -> vector<4x16x16xf32>
    %5 = vector.extract_strided_slice %0 {offsets = [0, 0, 1], sizes = [4, 16, 15], strides = [1, 1, 1]} : vector<4x16x16xf32> to vector<4x16x15xf32>
    %6 = vector.extract_strided_slice %0 {offsets = [0, 0, 14], sizes = [4, 16, 1], strides = [1, 1, 1]} : vector<4x16x16xf32> to vector<4x16x1xf32>
    %7 = tpu.concatenate %5, %6 in 2 : vector<4x16x15xf32>, vector<4x16x1xf32> -> vector<4x16x16xf32>
    %8 = arith.addf %4, %0 : vector<4x16x16xf32>
    %9 = arith.addf %8, %7 : vector<4x16x16xf32>
    %10 = vector.extract_strided_slice %9 {offsets = [0, 1, 0], sizes = [4, 1, 16], strides = [1, 1, 1]} : vector<4x16x16xf32> to vector<4x1x16xf32>
    %11 = vector.extract_strided_slice %9 {offsets = [0, 0, 0], sizes = [4, 15, 16], strides = [1, 1, 1]} : vector<4x16x16xf32> to vector<4x15x16xf32>
    %12 = tpu.concatenate %10, %11 in 1 : vector<4x1x16xf32>, vector<4x15x16xf32> -> vector<4x16x16xf32>
    %13 = vector.extract_strided_slice %9 {offsets = [0, 1, 0], sizes = [4, 15, 16], strides = [1, 1, 1]} : vector<4x16x16xf32> to vector<4x15x16xf32>
    %14 = vector.extract_strided_slice %9 {offsets = [0, 14, 0], sizes = [4, 1, 16], strides = [1, 1, 1]} : vector<4x16x16xf32> to vector<4x1x16xf32>
    %15 = tpu.concatenate %13, %14 in 1 : vector<4x15x16xf32>, vector<4x1x16xf32> -> vector<4x16x16xf32>
    %16 = arith.addf %12, %9 : vector<4x16x16xf32>
    %17 = arith.addf %16, %15 : vector<4x16x16xf32>
    %cst = arith.constant 0.111111112 : f32
    %18 = vector.broadcast %cst : f32 to vector<4x16x16xf32>
    %19 = arith.mulf %17, %18 : vector<4x16x16xf32>
    %20 = vector.extract_strided_slice %1 {offsets = [0, 0, 1], sizes = [4, 16, 1], strides = [1, 1, 1]} : vector<4x16x16xf32> to vector<4x16x1xf32>
    %21 = vector.extract_strided_slice %1 {offsets = [0, 0, 0], sizes = [4, 16, 15], strides = [1, 1, 1]} : vector<4x16x16xf32> to vector<4x16x15xf32>
    %22 = tpu.concatenate %20, %21 in 2 : vector<4x16x1xf32>, vector<4x16x15xf32> -> vector<4x16x16xf32>
    %23 = vector.extract_strided_slice %1 {offsets = [0, 0, 1], sizes = [4, 16, 15], strides = [1, 1, 1]} : vector<4x16x16xf32> to vector<4x16x15xf32>
    %24 = vector.extract_strided_slice %1 {offsets = [0, 0, 14], sizes = [4, 16, 1], strides = [1, 1, 1]} : vector<4x16x16xf32> to vector<4x16x1xf32>
    %25 = tpu.concatenate %23, %24 in 2 : vector<4x16x15xf32>, vector<4x16x1xf32> -> vector<4x16x16xf32>
    %26 = arith.addf %22, %1 : vector<4x16x16xf32>
    %27 = arith.addf %26, %25 : vector<4x16x16xf32>
    %28 = vector.extract_strided_slice %27 {offsets = [0, 1, 0], sizes = [4, 1, 16], strides = [1, 1, 1]} : vector<4x16x16xf32> to vector<4x1x16xf32>
    %29 = vector.extract_strided_slice %27 {offsets = [0, 0, 0], sizes = [4, 15, 16], strides = [1, 1, 1]} : vector<4x16x16xf32> to vector<4x15x16xf32>
    %30 = tpu.concatenate %28, %29 in 1 : vector<4x1x16xf32>, vector<4x15x16xf32> -> vector<4x16x16xf32>
    %31 = vector.extract_strided_slice %27 {offsets = [0, 1, 0], sizes = [4, 15, 16], strides = [1, 1, 1]} : vector<4x16x16xf32> to vector<4x15x16xf32>
    %32 = vector.extract_strided_slice %27 {offsets = [0, 14, 0], sizes = [4, 1, 16], strides = [1, 1, 1]} : vector<4x16x16xf32> to vector<4x1x16xf32>
    %33 = tpu.concatenate %31, %32 in 1 : vector<4x15x16xf32>, vector<4x1x16xf32> -> vector<4x16x16xf32>
    %34 = arith.addf %30, %27 : vector<4x16x16xf32>
    %35 = arith.addf %34, %33 : vector<4x16x16xf32>
    %cst_5 = arith.constant 0.111111112 : f32
    %36 = vector.broadcast %cst_5 : f32 to vector<4x16x16xf32>
    %37 = arith.mulf %35, %36 : vector<4x16x16xf32>
    %38 = arith.mulf %0, %0 : vector<4x16x16xf32>
    %39 = vector.extract_strided_slice %38 {offsets = [0, 0, 1], sizes = [4, 16, 1], strides = [1, 1, 1]} : vector<4x16x16xf32> to vector<4x16x1xf32>
    %40 = vector.extract_strided_slice %38 {offsets = [0, 0, 0], sizes = [4, 16, 15], strides = [1, 1, 1]} : vector<4x16x16xf32> to vector<4x16x15xf32>
    %41 = tpu.concatenate %39, %40 in 2 : vector<4x16x1xf32>, vector<4x16x15xf32> -> vector<4x16x16xf32>
    %42 = vector.extract_strided_slice %38 {offsets = [0, 0, 1], sizes = [4, 16, 15], strides = [1, 1, 1]} : vector<4x16x16xf32> to vector<4x16x15xf32>
    %43 = vector.extract_strided_slice %38 {offsets = [0, 0, 14], sizes = [4, 16, 1], strides = [1, 1, 1]} : vector<4x16x16xf32> to vector<4x16x1xf32>
    %44 = tpu.concatenate %42, %43 in 2 : vector<4x16x15xf32>, vector<4x16x1xf32> -> vector<4x16x16xf32>
    %45 = arith.addf %41, %38 : vector<4x16x16xf32>
    %46 = arith.addf %45, %44 : vector<4x16x16xf32>
    %47 = vector.extract_strided_slice %46 {offsets = [0, 1, 0], sizes = [4, 1, 16], strides = [1, 1, 1]} : vector<4x16x16xf32> to vector<4x1x16xf32>
    %48 = vector.extract_strided_slice %46 {offsets = [0, 0, 0], sizes = [4, 15, 16], strides = [1, 1, 1]} : vector<4x16x16xf32> to vector<4x15x16xf32>
    %49 = tpu.concatenate %47, %48 in 1 : vector<4x1x16xf32>, vector<4x15x16xf32> -> vector<4x16x16xf32>
    %50 = vector.extract_strided_slice %46 {offsets = [0, 1, 0], sizes = [4, 15, 16], strides = [1, 1, 1]} : vector<4x16x16xf32> to vector<4x15x16xf32>
    %51 = vector.extract_strided_slice %46 {offsets = [0, 14, 0], sizes = [4, 1, 16], strides = [1, 1, 1]} : vector<4x16x16xf32> to vector<4x1x16xf32>
    %52 = tpu.concatenate %50, %51 in 1 : vector<4x15x16xf32>, vector<4x1x16xf32> -> vector<4x16x16xf32>
    %53 = arith.addf %49, %46 : vector<4x16x16xf32>
    %54 = arith.addf %53, %52 : vector<4x16x16xf32>
    %cst_6 = arith.constant 0.111111112 : f32
    %55 = vector.broadcast %cst_6 : f32 to vector<4x16x16xf32>
    %56 = arith.mulf %54, %55 : vector<4x16x16xf32>
    %57 = arith.mulf %19, %19 : vector<4x16x16xf32>
    %58 = arith.subf %56, %57 : vector<4x16x16xf32>
    %59 = arith.mulf %1, %1 : vector<4x16x16xf32>
    %60 = vector.extract_strided_slice %59 {offsets = [0, 0, 1], sizes = [4, 16, 1], strides = [1, 1, 1]} : vector<4x16x16xf32> to vector<4x16x1xf32>
    %61 = vector.extract_strided_slice %59 {offsets = [0, 0, 0], sizes = [4, 16, 15], strides = [1, 1, 1]} : vector<4x16x16xf32> to vector<4x16x15xf32>
    %62 = tpu.concatenate %60, %61 in 2 : vector<4x16x1xf32>, vector<4x16x15xf32> -> vector<4x16x16xf32>
    %63 = vector.extract_strided_slice %59 {offsets = [0, 0, 1], sizes = [4, 16, 15], strides = [1, 1, 1]} : vector<4x16x16xf32> to vector<4x16x15xf32>
    %64 = vector.extract_strided_slice %59 {offsets = [0, 0, 14], sizes = [4, 16, 1], strides = [1, 1, 1]} : vector<4x16x16xf32> to vector<4x16x1xf32>
    %65 = tpu.concatenate %63, %64 in 2 : vector<4x16x15xf32>, vector<4x16x1xf32> -> vector<4x16x16xf32>
    %66 = arith.addf %62, %59 : vector<4x16x16xf32>
    %67 = arith.addf %66, %65 : vector<4x16x16xf32>
    %68 = vector.extract_strided_slice %67 {offsets = [0, 1, 0], sizes = [4, 1, 16], strides = [1, 1, 1]} : vector<4x16x16xf32> to vector<4x1x16xf32>
    %69 = vector.extract_strided_slice %67 {offsets = [0, 0, 0], sizes = [4, 15, 16], strides = [1, 1, 1]} : vector<4x16x16xf32> to vector<4x15x16xf32>
    %70 = tpu.concatenate %68, %69 in 1 : vector<4x1x16xf32>, vector<4x15x16xf32> -> vector<4x16x16xf32>
    %71 = vector.extract_strided_slice %67 {offsets = [0, 1, 0], sizes = [4, 15, 16], strides = [1, 1, 1]} : vector<4x16x16xf32> to vector<4x15x16xf32>
    %72 = vector.extract_strided_slice %67 {offsets = [0, 14, 0], sizes = [4, 1, 16], strides = [1, 1, 1]} : vector<4x16x16xf32> to vector<4x1x16xf32>
    %73 = tpu.concatenate %71, %72 in 1 : vector<4x15x16xf32>, vector<4x1x16xf32> -> vector<4x16x16xf32>
    %74 = arith.addf %70, %67 : vector<4x16x16xf32>
    %75 = arith.addf %74, %73 : vector<4x16x16xf32>
    %cst_7 = arith.constant 0.111111112 : f32
    %76 = vector.broadcast %cst_7 : f32 to vector<4x16x16xf32>
    %77 = arith.mulf %75, %76 : vector<4x16x16xf32>
    %78 = arith.mulf %37, %37 : vector<4x16x16xf32>
    %79 = arith.subf %77, %78 : vector<4x16x16xf32>
    %80 = arith.mulf %0, %1 : vector<4x16x16xf32>
    %81 = vector.extract_strided_slice %80 {offsets = [0, 0, 1], sizes = [4, 16, 1], strides = [1, 1, 1]} : vector<4x16x16xf32> to vector<4x16x1xf32>
    %82 = vector.extract_strided_slice %80 {offsets = [0, 0, 0], sizes = [4, 16, 15], strides = [1, 1, 1]} : vector<4x16x16xf32> to vector<4x16x15xf32>
    %83 = tpu.concatenate %81, %82 in 2 : vector<4x16x1xf32>, vector<4x16x15xf32> -> vector<4x16x16xf32>
    %84 = vector.extract_strided_slice %80 {offsets = [0, 0, 1], sizes = [4, 16, 15], strides = [1, 1, 1]} : vector<4x16x16xf32> to vector<4x16x15xf32>
    %85 = vector.extract_strided_slice %80 {offsets = [0, 0, 14], sizes = [4, 16, 1], strides = [1, 1, 1]} : vector<4x16x16xf32> to vector<4x16x1xf32>
    %86 = tpu.concatenate %84, %85 in 2 : vector<4x16x15xf32>, vector<4x16x1xf32> -> vector<4x16x16xf32>
    %87 = arith.addf %83, %80 : vector<4x16x16xf32>
    %88 = arith.addf %87, %86 : vector<4x16x16xf32>
    %89 = vector.extract_strided_slice %88 {offsets = [0, 1, 0], sizes = [4, 1, 16], strides = [1, 1, 1]} : vector<4x16x16xf32> to vector<4x1x16xf32>
    %90 = vector.extract_strided_slice %88 {offsets = [0, 0, 0], sizes = [4, 15, 16], strides = [1, 1, 1]} : vector<4x16x16xf32> to vector<4x15x16xf32>
    %91 = tpu.concatenate %89, %90 in 1 : vector<4x1x16xf32>, vector<4x15x16xf32> -> vector<4x16x16xf32>
    %92 = vector.extract_strided_slice %88 {offsets = [0, 1, 0], sizes = [4, 15, 16], strides = [1, 1, 1]} : vector<4x16x16xf32> to vector<4x15x16xf32>
    %93 = vector.extract_strided_slice %88 {offsets = [0, 14, 0], sizes = [4, 1, 16], strides = [1, 1, 1]} : vector<4x16x16xf32> to vector<4x1x16xf32>
    %94 = tpu.concatenate %92, %93 in 1 : vector<4x15x16xf32>, vector<4x1x16xf32> -> vector<4x16x16xf32>
    %95 = arith.addf %91, %88 : vector<4x16x16xf32>
    %96 = arith.addf %95, %94 : vector<4x16x16xf32>
    %cst_8 = arith.constant 0.111111112 : f32
    %97 = vector.broadcast %cst_8 : f32 to vector<4x16x16xf32>
    %98 = arith.mulf %96, %97 : vector<4x16x16xf32>
    %99 = arith.mulf %19, %37 : vector<4x16x16xf32>
    %100 = arith.subf %98, %99 : vector<4x16x16xf32>
    %cst_9 = arith.constant 2.000000e+00 : f32
    %101 = vector.broadcast %cst_9 : f32 to vector<4x16x16xf32>
    %102 = arith.mulf %101, %19 : vector<4x16x16xf32>
    %103 = arith.mulf %102, %37 : vector<4x16x16xf32>
    %cst_10 = arith.constant 9.99999974E-5 : f32
    %104 = vector.broadcast %cst_10 : f32 to vector<4x16x16xf32>
    %105 = arith.addf %103, %104 : vector<4x16x16xf32>
    %cst_11 = arith.constant 2.000000e+00 : f32
    %106 = vector.broadcast %cst_11 : f32 to vector<4x16x16xf32>
    %107 = arith.mulf %106, %100 : vector<4x16x16xf32>
    %cst_12 = arith.constant 8.99999984E-4 : f32
    %108 = vector.broadcast %cst_12 : f32 to vector<4x16x16xf32>
    %109 = arith.addf %107, %108 : vector<4x16x16xf32>
    %110 = arith.mulf %105, %109 : vector<4x16x16xf32>
    %111 = arith.mulf %19, %19 : vector<4x16x16xf32>
    %112 = arith.mulf %37, %37 : vector<4x16x16xf32>
    %113 = arith.addf %111, %112 : vector<4x16x16xf32>
    %cst_13 = arith.constant 9.99999974E-5 : f32
    %114 = vector.broadcast %cst_13 : f32 to vector<4x16x16xf32>
    %115 = arith.addf %113, %114 : vector<4x16x16xf32>
    %116 = arith.addf %58, %79 : vector<4x16x16xf32>
    %cst_14 = arith.constant 8.99999984E-4 : f32
    %117 = vector.broadcast %cst_14 : f32 to vector<4x16x16xf32>
    %118 = arith.addf %116, %117 : vector<4x16x16xf32>
    %119 = arith.mulf %115, %118 : vector<4x16x16xf32>
    %120 = tpu.reciprocal %119 : vector<4x16x16xf32> -> vector<4x16x16xf32>
    %121 = arith.mulf %110, %120 : vector<4x16x16xf32>
    %cst_15 = arith.constant 1.000000e+00 : f32
    %122 = vector.broadcast %cst_15 : f32 to vector<4x16x16xf32>
    %123 = arith.subf %122, %121 : vector<4x16x16xf32>
    %cst_16 = arith.constant 5.000000e-01 : f32
    %124 = vector.broadcast %cst_16 : f32 to vector<4x16x16xf32>
    %125 = arith.mulf %123, %124 : vector<4x16x16xf32>
    %cst_17 = arith.constant 0.000000e+00 : f32
    %cst_18 = arith.constant 1.000000e+00 : f32
    %126 = vector.broadcast %cst_17 : f32 to vector<4x16x16xf32>
    %127 = arith.maximumf %126, %125 : vector<4x16x16xf32>
    %128 = vector.broadcast %cst_18 : f32 to vector<4x16x16xf32>
    %129 = arith.minimumf %128, %127 : vector<4x16x16xf32>
    %c0_19 = arith.constant 0 : index
    %c0_20 = arith.constant 0 : index
    %c0_21 = arith.constant 0 : index
    %130 = vector.load %arg3[%c0_19, %c0_20, %c0_21] : memref<4x16x16xf32, #tpu.memory_space<vmem>>, vector<4x16x16xf32>
    tpu.vector_store %arg3[%c0_19, %c0_20, %c0_21], %129 {strides = array<i32>} : memref<4x16x16xf32, #tpu.memory_space<vmem>>, vector<4x16x16xf32>,
    return
  }
  func.func @transform_0(%arg0: i32) -> (i32, i32, i32) {
    %c0_i32 = arith.constant 0 : i32
    %c0_i32_0 = arith.constant 0 : i32
    %c0_i32_1 = arith.constant 0 : i32
    return %arg0, %c0_i32, %c0_i32_0 : i32, i32, i32
  }
  func.func @transform_1(%arg0: i32) -> (i32, i32, i32) {
    %c0_i32 = arith.constant 0 : i32
    %c0_i32_0 = arith.constant 0 : i32
    %c0_i32_1 = arith.constant 0 : i32
    return %arg0, %c0_i32, %c0_i32_0 : i32, i32, i32
  }
  func.func @transform_2(%arg0: i32) -> (i32, i32, i32) {
    %c0_i32 = arith.constant 0 : i32
    %c0_i32_0 = arith.constant 0 : i32
    %c0_i32_1 = arith.constant 0 : i32
    return %arg0, %c0_i32, %c0_i32_0 : i32, i32, i32
  }
}

</mosaic_0001>

<llo_original>
// kernel: tpu_custom_call.1
$region0: #{tpu_custom_call.1}
  #allocation0 [shape = 'u32[]', space=smem, size = 0x4, offset = 0x4, fixed_abs, tag = 'smem constant byte address 0x4 - core index']
  #allocation1 [shape = 'u32[144,128]{1,0:T(1,128)}', space=vmem, size = 0x12000, scoped, tag = 'internal scratch']
  %s0 = inlined_call_operand.hbm [shape: f32[8,16,16], index: 0, kind: input, shape index: {}]
  %s1 = inlined_call_operand.hbm [shape: f32[8,16,16], index: 1, kind: input, shape index: {}]
  %s2 = inlined_call_operand.hbm [shape: f32[8,16,16], index: 2, kind: output, shape index: {}]
  %s3 = sld [smem:[#allocation0]]
  $region49: #{tpu_custom_call.1} parent=0
    _
  %s5 = ssub.s32 1, %s3
  %s6 = scalar_select 0, %s5, %s3
  $region1: #{tpu_custom_call.1} parent=0
    #allocation2 [shape = 'u8[65536]{0}', space=vmem, size = 0x10000, scoped, tag = 'input window, operand 0']
    #allocation3 [shape = 's32[2]{0}', space=sflag, size = 0x8, scoped, tag = 'scoped memory for tpu_custom_call.1']
    #allocation4 [shape = 's32[2]{0}', space=sflag, size = 0x8, scoped, tag = 'scoped memory for tpu_custom_call.1']
    #allocation5 [shape = 'u8[65536]{0}', space=vmem, size = 0x10000, scoped, tag = 'input window, operand 1']
    #allocation6 [shape = 's32[2]{0}', space=sflag, size = 0x8, scoped, tag = 'scoped memory for tpu_custom_call.1']
    #allocation7 [shape = 'u8[65536]{0}', space=vmem, size = 0x10000, scoped, tag = 'output window, operand 0']
    %7 = vsyncpa [#allocation3], 0
    %s8 = scalar_lea.sflag [#allocation3], 1
    %9 = vsyncpa %s8, 0
    %10 = vsyncpa [#allocation6], 0
    %s11 = scalar_lea.sflag [#allocation6], 1
    %12 = vsyncpa %s11, 0
    %13 = vsyncpa [#allocation4], 0
    %s14 = scalar_lea.sflag [#allocation4], 1
    %15 = vsyncpa %s14, 0
    loop: start=0, step=1, limit=4
    $region2: #{tpu_custom_call.1} parent=1 // loop_pre_header
      _
    $region3: #{tpu_custom_call.1} parent=1 // loop_header
      %s17 = sphi 0, %s21
      %p18 = scmp.ge.s32.totalorder %s17, 4
      %s27 = sphi 0, %s29
      %s30 = sphi 0, %s27
      %s31 = sphi 0, %s30
      %s47 = sphi 0, %s31
      %s53 = sphi 0, %s55
      %s56 = sphi 0, %s53
      %s57 = sphi 0, %s56
      %s73 = sphi 0, %s57
      %s79 = sphi 0, %s81
      %s82 = sphi 0, %s79
      %s83 = sphi 0, %s82
      %s99 = sphi 0, %s83
    $region4: #{tpu_custom_call.1} parent=1 // loop_header_branch
      %20 = sbr.rel (%p18) target = $region8
    $region5: #{tpu_custom_call.1} parent=1 // loop_body
      %s22 = ssub.s32 %s17, 1
      %s23 = ssub.s32 %s17, 2
      %s24 = sadd.s32 %s17, 1
      %s25 = ssub.s32 %s17, %s24
      %p26 = scmp.eq.s32.totalorder %s25, 0
      %s28 = sadd.s32 %s27, 1
      %s29 = scalar_select %p26, %s27, %s28
      %p32 = pneg %p26
      %p33 = scmp.eq.s32.totalorder %s17, 1
      %p34 = por %p32, %p33
      %p35 = scmp.ne.s32.totalorder %s27, %s30
      %p36 = scmp.eq.s32.totalorder %s17, 0
      %p37 = por %p35, %p36
      %p38 = scmp.ne.s32.totalorder %s27, %s30
      %p39 = scmp.eq.s32.totalorder %s22, 1
      %p40 = por %p38, %p39
      %p41 = scmp.ne.s32.totalorder %s30, %s31
      %p42 = scmp.eq.s32.totalorder %s22, 0
      %p43 = por %p41, %p42
      %p44 = scmp.ne.s32.totalorder %s30, %s31
      %p45 = scmp.eq.s32.totalorder %s23, 1
      %p46 = por %p44, %p45
      %p48 = scmp.ne.s32.totalorder %s31, %s47
      %p49 = scmp.eq.s32.totalorder %s23, 0
      %p50 = por %p48, %p49
      %s51 = ssub.s32 %s17, %s24
      %p52 = scmp.eq.s32.totalorder %s51, 0
      %s54 = sadd.s32 %s53, 1
      %s55 = scalar_select %p52, %s53, %s54
      %p58 = pneg %p52
      %p59 = scmp.eq.s32.totalorder %s17, 1
      %p60 = por %p58, %p59
      %p61 = scmp.ne.s32.totalorder %s53, %s56
      %p62 = scmp.eq.s32.totalorder %s17, 0
      %p63 = por %p61, %p62
      %p64 = scmp.ne.s32.totalorder %s53, %s56
      %p65 = scmp.eq.s32.totalorder %s22, 1
      %p66 = por %p64, %p65
      %p67 = scmp.ne.s32.totalorder %s56, %s57
      %p68 = scmp.eq.s32.totalorder %s22, 0
      %p69 = por %p67, %p68
      %p70 = scmp.ne.s32.totalorder %s56, %s57
      %p71 = scmp.eq.s32.totalorder %s23, 1
      %p72 = por %p70, %p71
      %p74 = scmp.ne.s32.totalorder %s57, %s73
      %p75 = scmp.eq.s32.totalorder %s23, 0
      %p76 = por %p74, %p75
      %s77 = ssub.s32 %s17, %s24
      %p78 = scmp.eq.s32.totalorder %s77, 0
      %s80 = sadd.s32 %s79, 1
      %s81 = scalar_select %p78, %s79, %s80
      %p84 = pneg %p78
      %p85 = scmp.eq.s32.totalorder %s17, 1
      %p86 = por %p84, %p85
      %p87 = scmp.ne.s32.totalorder %s79, %s82
      %p88 = scmp.eq.s32.totalorder %s17, 0
      %p89 = por %p87, %p88
      %p90 = scmp.ne.s32.totalorder %s79, %s82
      %p91 = scmp.eq.s32.totalorder %s22, 1
      %p92 = por %p90, %p91
      %p93 = scmp.ne.s32.totalorder %s82, %s83
      %p94 = scmp.eq.s32.totalorder %s22, 0
      %p95 = por %p93, %p94
      %p96 = scmp.ne.s32.totalorder %s82, %s83
      %p97 = scmp.eq.s32.totalorder %s23, 1
      %p98 = por %p96, %p97
      %p100 = scmp.ne.s32.totalorder %s83, %s99
      %p101 = scmp.eq.s32.totalorder %s23, 0
      %p102 = por %p100, %p101
      %p103 = scmp.le.s32.totalorder 1, %s17
      %p104 = scmp.lt.s32.totalorder %s17, 3
      %p105 = pnand %p103, %p104
      %p106 = pneg %p105
      // Predicated region
      $region9: #{tpu_custom_call.1} parent=5 // pred_check
        _
      $region10: #{tpu_custom_call.1} parent=5 // pred_check_branch
        %108 = sbr.rel (%p105) target = $region12
      $region11: #{tpu_custom_call.1} parent=5 // pred_region
        %s109 = ssub.s32 %s17, 1
      $region12: #{tpu_custom_call.1} parent=5 // pred_fallthru
        _
      %p110 = scmp.lt.s32.totalorder %s17, 2
      // Predicated region
      $region13: #{tpu_custom_call.1} parent=5 // pred_check
        %p111 = pneg %p110
      $region14: #{tpu_custom_call.1} parent=5 // pred_check_branch
        %113 = sbr.rel (%p111) target = $region16
      $region15: #{tpu_custom_call.1} parent=5 // pred_region
        // Predicated region
        $region17: #{tpu_custom_call.1} parent=15 // pred_check
          %p114 = pneg %p37
        $region18: #{tpu_custom_call.1} parent=15 // pred_check_branch
          %116 = sbr.rel (%p114) target = $region20
        $region19: #{tpu_custom_call.1} parent=15 // pred_region
          %s117 = sand.u32 %s27, 1
          %s118 = scalar_lea.sflag [#allocation3], %s117
          %s119 = sand.u32 %s27, 1
          %s120 = smul.addr %s119, 64
          %s121 = scalar_lea.vmem [#allocation2], %s120
          %s122 = smul.u32 4, %s17
          %s124 = ssub.s32 1024, 1024
          %125 = vsyncadd %s118, %s124
          %s126 = smul.addr %s122, 2
          %s127 = smul.addr %s126, 128
          %s128 = scalar_lea.hbm %s0, %s127
          %s129 = sshll.u32 %s121, 4
          %s130 = int_to_ptr.vmem [resolvable:$true] %s129
          %135 = dma.hbm_to_vmem [thread:$0]  %s128, 1024, %s130, %s118, 128, 128, 8
        $region20: #{tpu_custom_call.1} parent=15 // pred_fallthru
          _
        // Predicated region
        $region21: #{tpu_custom_call.1} parent=15 // pred_check
          %p136 = pneg %p63
        $region22: #{tpu_custom_call.1} parent=15 // pred_check_branch
          %138 = sbr.rel (%p136) target = $region24
        $region23: #{tpu_custom_call.1} parent=15 // pred_region
          %s139 = sand.u32 %s53, 1
          %s140 = scalar_lea.sflag [#allocation6], %s139
          %s141 = sand.u32 %s53, 1
          %s142 = smul.addr %s141, 64
          %s143 = scalar_lea.vmem [#allocation5], %s142
          %s144 = smul.u32 4, %s17
          %s146 = ssub.s32 1024, 1024
          %147 = vsyncadd %s140, %s146
          %s148 = smul.addr %s144, 2
          %s149 = smul.addr %s148, 128
          %s150 = scalar_lea.hbm %s1, %s149
          %s151 = sshll.u32 %s143, 4
          %s152 = int_to_ptr.vmem [resolvable:$true] %s151
          %157 = dma.hbm_to_vmem [thread:$0]  %s150, 1024, %s152, %s140, 128, 128, 8
        $region24: #{tpu_custom_call.1} parent=15 // pred_fallthru
          _
      $region16: #{tpu_custom_call.1} parent=5 // pred_fallthru
        _
      %p158 = scmp.le.s32.totalorder 1, %s17
      %p159 = scmp.lt.s32.totalorder %s17, 3
      %p160 = pnand %p158, %p159
      %p161 = pneg %p160
      // Predicated region
      $region25: #{tpu_custom_call.1} parent=5 // pred_check
        _
      $region26: #{tpu_custom_call.1} parent=5 // pred_check_branch
        %163 = sbr.rel (%p160) target = $region28
      $region27: #{tpu_custom_call.1} parent=5 // pred_region
        %s164 = ssub.s32 %s17, 1
        %s165 = sand.u32 %s30, 1
        %s166 = scalar_lea.sflag [#allocation3], %s165
        %s167 = sand.u32 %s30, 1
        %s168 = smul.addr %s167, 64
        %s169 = scalar_lea.vmem [#allocation2], %s168
        // Predicated region
        $region29: #{tpu_custom_call.1} parent=27 // pred_check
          %p170 = pneg %p43
        $region30: #{tpu_custom_call.1} parent=27 // pred_check_branch
          %172 = sbr.rel (%p170) target = $region32
        $region31: #{tpu_custom_call.1} parent=27 // pred_region
          %173 = dma.done %s166, 1024
        $region32: #{tpu_custom_call.1} parent=27 // pred_fallthru
          _
        %s174 = sand.u32 %s56, 1
        %s175 = scalar_lea.sflag [#allocation6], %s174
        %s176 = sand.u32 %s56, 1
        %s177 = smul.addr %s176, 64
        %s178 = scalar_lea.vmem [#allocation5], %s177
        // Predicated region
        $region33: #{tpu_custom_call.1} parent=27 // pred_check
          %p179 = pneg %p69
        $region34: #{tpu_custom_call.1} parent=27 // pred_check_branch
          %181 = sbr.rel (%p179) target = $region36
        $region35: #{tpu_custom_call.1} parent=27 // pred_region
          %182 = dma.done %s175, 1024
        $region36: #{tpu_custom_call.1} parent=27 // pred_fallthru
          _
        %s183 = sand.u32 %s30, 1
        %s184 = scalar_lea.sflag [#allocation3], %s183
        %s185 = sand.u32 %s30, 1
        %s186 = smul.addr %s185, 64
        %s187 = scalar_lea.vmem [#allocation2], %s186
        %p188 = pneg %p43
        %p189 = pneg %p40
        %s190 = sand.u32 %s56, 1
        %s191 = scalar_lea.sflag [#allocation6], %s190
        %s192 = sand.u32 %s56, 1
        %s193 = smul.addr %s192, 64
        %s194 = scalar_lea.vmem [#allocation5], %s193
        %p195 = pneg %p69
        %p196 = pneg %p66
        %p197 = pneg %p95
        %p198 = pneg %p92
        %s199 = sand.u32 %s82, 1
        %s200 = scalar_lea.sflag [#allocation4], %s199
        %s201 = sand.u32 %s82, 1
        %s202 = smul.addr %s201, 64
        %s203 = scalar_lea.vmem [#allocation7], %s202
        %s204 = smul.u32 4, %s22
        %s205 = smul.u32 4, %s22
        %s206 = smul.u32 4, %s22
        %v207 = vld [vmem:[%s169] sm:$0xff]
        %v208 = vld [vmem:[%s169 + $0x8] sm:$0xff]
        %v209 = vld [vmem:[%s169 + $0x10] sm:$0xff]
        %v210 = vld [vmem:[%s169 + $0x18] sm:$0xff]
        %v211 = vld [vmem:[%s169 + $0x20] sm:$0xff]
        %v212 = vld [vmem:[%s169 + $0x28] sm:$0xff]
        %v213 = vld [vmem:[%s169 + $0x30] sm:$0xff]
        %v214 = vld [vmem:[%s169 + $0x38] sm:$0xff]
        %v215 = vld [vmem:[%s178] sm:$0xff]
        %v216 = vld [vmem:[%s178 + $0x8] sm:$0xff]
        %v217 = vld [vmem:[%s178 + $0x10] sm:$0xff]
        %v218 = vld [vmem:[%s178 + $0x18] sm:$0xff]
        %v219 = vld [vmem:[%s178 + $0x20] sm:$0xff]
        %v220 = vld [vmem:[%s178 + $0x28] sm:$0xff]
        %v221 = vld [vmem:[%s178 + $0x30] sm:$0xff]
        %v222 = vld [vmem:[%s178 + $0x38] sm:$0xff]
        %231 = vrot.lane.b32.xlu0 %v207, 127
        %v232 = vpop.permute.xlu0 %231
        %233 = vrot.lane.b32.xlu0 %v208, 127
        %v234 = vpop.permute.xlu0 %233
        %235 = vrot.lane.b32.xlu0 %v209, 127
        %v236 = vpop.permute.xlu0 %235
        %237 = vrot.lane.b32.xlu0 %v210, 127
        %v238 = vpop.permute.xlu0 %237
        %239 = vrot.lane.b32.xlu0 %v211, 127
        %v240 = vpop.permute.xlu0 %239
        %241 = vrot.lane.b32.xlu0 %v212, 127
        %v242 = vpop.permute.xlu0 %241
        %243 = vrot.lane.b32.xlu0 %v213, 127
        %v244 = vpop.permute.xlu0 %243
        %245 = vrot.lane.b32.xlu0 %v214, 127
        %v246 = vpop.permute.xlu0 %245
        %255 = vrot.lane.b32.xlu0 %v207, 1
        %v256 = vpop.permute.xlu0 %255
        %257 = vrot.lane.b32.xlu0 %v208, 1
        %v258 = vpop.permute.xlu0 %257
        %259 = vrot.lane.b32.xlu0 %v209, 1
        %v260 = vpop.permute.xlu0 %259
        %261 = vrot.lane.b32.xlu0 %v210, 1
        %v262 = vpop.permute.xlu0 %261
        %263 = vrot.lane.b32.xlu0 %v211, 1
        %v264 = vpop.permute.xlu0 %263
        %265 = vrot.lane.b32.xlu0 %v212, 1
        %v266 = vpop.permute.xlu0 %265
        %267 = vrot.lane.b32.xlu0 %v213, 1
        %v268 = vpop.permute.xlu0 %267
        %269 = vrot.lane.b32.xlu0 %v214, 1
        %v270 = vpop.permute.xlu0 %269
        %vm279 = vcmask 7168
        %v280 = vsel %vm279, %v232, %v256
        %v281 = vsel %vm279, %v234, %v258
        %v282 = vsel %vm279, %v236, %v260
        %v283 = vsel %vm279, %v238, %v262
        %v284 = vsel %vm279, %v240, %v264
        %v285 = vsel %vm279, %v242, %v266
        %v286 = vsel %vm279, %v244, %v268
        %v287 = vsel %vm279, %v246, %v270
        %vm288 = vcmask 121856
        %v289 = vsel %vm288, %v232, %v256
        %v290 = vsel %vm288, %v234, %v258
        %v291 = vsel %vm288, %v236, %v260
        %v292 = vsel %vm288, %v238, %v262
        %v293 = vsel %vm288, %v240, %v264
        %v294 = vsel %vm288, %v242, %v266
        %v295 = vsel %vm288, %v244, %v268
        %v296 = vsel %vm288, %v246, %v270
        %v297 = vadd.f32 %v280, %v207
        %v298 = vadd.f32 %v281, %v208
        %v299 = vadd.f32 %v282, %v209
        %v300 = vadd.f32 %v283, %v210
        %v301 = vadd.f32 %v284, %v211
        %v302 = vadd.f32 %v285, %v212
        %v303 = vadd.f32 %v286, %v213
        %v304 = vadd.f32 %v287, %v214
        %v305 = vadd.f32 %v297, %v289
        %v306 = vadd.f32 %v298, %v290
        %v307 = vadd.f32 %v299, %v291
        %v308 = vadd.f32 %v300, %v292
        %v309 = vadd.f32 %v301, %v293
        %v310 = vadd.f32 %v302, %v294
        %v311 = vadd.f32 %v303, %v295
        %v312 = vadd.f32 %v304, %v296
        %v317 = vrot.slane %v305, 1
        %v318 = vrot.slane %v307, 1
        %v319 = vrot.slane %v309, 1
        %v320 = vrot.slane %v311, 1
        %vm329 = vcmask 1040384
        %v330 = vrot.slane %v305, 7
        %v331 = vrot.slane %v306, 7
        %v332 = vsel %vm329, %v330, %v331
        %v333 = vrot.slane %v307, 7
        %v334 = vrot.slane %v308, 7
        %v335 = vsel %vm329, %v333, %v334
        %v336 = vrot.slane %v309, 7
        %v337 = vrot.slane %v310, 7
        %v338 = vsel %vm329, %v336, %v337
        %v339 = vrot.slane %v311, 7
        %v340 = vrot.slane %v312, 7
        %v341 = vsel %vm329, %v339, %v340
        %v350 = vsel %vm329, %v317, %v330
        %v351 = vsel %vm329, %v318, %v333
        %v352 = vsel %vm329, %v319, %v336
        %v353 = vsel %vm329, %v320, %v339
        %vm354 = vcmask 1046528
        %v355 = vrot.slane %v306, 1
        %v356 = vsel %vm354, %v317, %v355
        %v357 = vrot.slane %v308, 1
        %v358 = vsel %vm354, %v318, %v357
        %v359 = vrot.slane %v310, 1
        %v360 = vsel %vm354, %v319, %v359
        %v361 = vrot.slane %v312, 1
        %v362 = vsel %vm354, %v320, %v361
        %v375 = vsel %vm354, %v355, %v331
        %v376 = vsel %vm354, %v357, %v334
        %v377 = vsel %vm354, %v359, %v337
        %v378 = vsel %vm354, %v361, %v340
        %v379 = vadd.f32 %v350, %v305
        %v380 = vadd.f32 %v332, %v306
        %v381 = vadd.f32 %v351, %v307
        %v382 = vadd.f32 %v335, %v308
        %v383 = vadd.f32 %v352, %v309
        %v384 = vadd.f32 %v338, %v310
        %v385 = vadd.f32 %v353, %v311
        %v386 = vadd.f32 %v341, %v312
        %v387 = vadd.f32 %v379, %v356
        %v388 = vadd.f32 %v380, %v375
        %v389 = vadd.f32 %v381, %v358
        %v390 = vadd.f32 %v382, %v376
        %v391 = vadd.f32 %v383, %v360
        %v392 = vadd.f32 %v384, %v377
        %v393 = vadd.f32 %v385, %v362
        %v394 = vadd.f32 %v386, %v378
        %v395 = vmul.f32 %v387, 0.11111111
        %v396 = vmul.f32 %v388, 0.11111111
        %v397 = vmul.f32 %v389, 0.11111111
        %v398 = vmul.f32 %v390, 0.11111111
        %v399 = vmul.f32 %v391, 0.11111111
        %v400 = vmul.f32 %v392, 0.11111111
        %v401 = vmul.f32 %v393, 0.11111111
        %v402 = vmul.f32 %v394, 0.11111111
        %411 = vrot.lane.b32.xlu0 %v215, 127
        %v412 = vpop.permute.xlu0 %411
        %413 = vrot.lane.b32.xlu0 %v216, 127
        %v414 = vpop.permute.xlu0 %413
        %415 = vrot.lane.b32.xlu0 %v217, 127
        %v416 = vpop.permute.xlu0 %415
        %417 = vrot.lane.b32.xlu0 %v218, 127
        %v418 = vpop.permute.xlu0 %417
        %419 = vrot.lane.b32.xlu0 %v219, 127
        %v420 = vpop.permute.xlu0 %419
        %421 = vrot.lane.b32.xlu0 %v220, 127
        %v422 = vpop.permute.xlu0 %421
        %423 = vrot.lane.b32.xlu0 %v221, 127
        %v424 = vpop.permute.xlu0 %423
        %425 = vrot.lane.b32.xlu0 %v222, 127
        %v426 = vpop.permute.xlu0 %425
        %435 = vrot.lane.b32.xlu0 %v215, 1
        %v436 = vpop.permute.xlu0 %435
        %437 = vrot.lane.b32.xlu0 %v216, 1
        %v438 = vpop.permute.xlu0 %437
        %439 = vrot.lane.b32.xlu0 %v217, 1
        %v440 = vpop.permute.xlu0 %439
        %441 = vrot.lane.b32.xlu0 %v218, 1
        %v442 = vpop.permute.xlu0 %441
        %443 = vrot.lane.b32.xlu0 %v219, 1
        %v444 = vpop.permute.xlu0 %443
        %445 = vrot.lane.b32.xlu0 %v220, 1
        %v446 = vpop.permute.xlu0 %445
        %447 = vrot.lane.b32.xlu0 %v221, 1
        %v448 = vpop.permute.xlu0 %447
        %449 = vrot.lane.b32.xlu0 %v222, 1
        %v450 = vpop.permute.xlu0 %449
        %v459 = vsel %vm279, %v412, %v436
        %v460 = vsel %vm279, %v414, %v438
        %v461 = vsel %vm279, %v416, %v440
        %v462 = vsel %vm279, %v418, %v442
        %v463 = vsel %vm279, %v420, %v444
        %v464 = vsel %vm279, %v422, %v446
        %v465 = vsel %vm279, %v424, %v448
        %v466 = vsel %vm279, %v426, %v450
        %v467 = vsel %vm288, %v412, %v436
        %v468 = vsel %vm288, %v414, %v438
        %v469 = vsel %vm288, %v416, %v440
        %v470 = vsel %vm288, %v418, %v442
        %v471 = vsel %vm288, %v420, %v444
        %v472 = vsel %vm288, %v422, %v446
        %v473 = vsel %vm288, %v424, %v448
        %v474 = vsel %vm288, %v426, %v450
        %v475 = vadd.f32 %v459, %v215
        %v476 = vadd.f32 %v460, %v216
        %v477 = vadd.f32 %v461, %v217
        %v478 = vadd.f32 %v462, %v218
        %v479 = vadd.f32 %v463, %v219
        %v480 = vadd.f32 %v464, %v220
        %v481 = vadd.f32 %v465, %v221
        %v482 = vadd.f32 %v466, %v222
        %v483 = vadd.f32 %v475, %v467
        %v484 = vadd.f32 %v476, %v468
        %v485 = vadd.f32 %v477, %v469
        %v486 = vadd.f32 %v478, %v470
        %v487 = vadd.f32 %v479, %v471
        %v488 = vadd.f32 %v480, %v472
        %v489 = vadd.f32 %v481, %v473
        %v490 = vadd.f32 %v482, %v474
        %v495 = vrot.slane %v483, 1
        %v496 = vrot.slane %v485, 1
        %v497 = vrot.slane %v487, 1
        %v498 = vrot.slane %v489, 1
        %v507 = vrot.slane %v483, 7
        %v508 = vrot.slane %v484, 7
        %v509 = vsel %vm329, %v507, %v508
        %v510 = vrot.slane %v485, 7
        %v511 = vrot.slane %v486, 7
        %v512 = vsel %vm329, %v510, %v511
        %v513 = vrot.slane %v487, 7
        %v514 = vrot.slane %v488, 7
        %v515 = vsel %vm329, %v513, %v514
        %v516 = vrot.slane %v489, 7
        %v517 = vrot.slane %v490, 7
        %v518 = vsel %vm329, %v516, %v517
        %v527 = vsel %vm329, %v495, %v507
        %v528 = vsel %vm329, %v496, %v510
        %v529 = vsel %vm329, %v497, %v513
        %v530 = vsel %vm329, %v498, %v516
        %v531 = vrot.slane %v484, 1
        %v532 = vsel %vm354, %v495, %v531
        %v533 = vrot.slane %v486, 1
        %v534 = vsel %vm354, %v496, %v533
        %v535 = vrot.slane %v488, 1
        %v536 = vsel %vm354, %v497, %v535
        %v537 = vrot.slane %v490, 1
        %v538 = vsel %vm354, %v498, %v537
        %v551 = vsel %vm354, %v531, %v508
        %v552 = vsel %vm354, %v533, %v511
        %v553 = vsel %vm354, %v535, %v514
        %v554 = vsel %vm354, %v537, %v517
        %v555 = vadd.f32 %v527, %v483
        %v556 = vadd.f32 %v509, %v484
        %v557 = vadd.f32 %v528, %v485
        %v558 = vadd.f32 %v512, %v486
        %v559 = vadd.f32 %v529, %v487
        %v560 = vadd.f32 %v515, %v488
        %v561 = vadd.f32 %v530, %v489
        %v562 = vadd.f32 %v518, %v490
        %v563 = vadd.f32 %v555, %v532
        %v564 = vadd.f32 %v556, %v551
        %v565 = vadd.f32 %v557, %v534
        %v566 = vadd.f32 %v558, %v552
        %v567 = vadd.f32 %v559, %v536
        %v568 = vadd.f32 %v560, %v553
        %v569 = vadd.f32 %v561, %v538
        %v570 = vadd.f32 %v562, %v554
        %v571 = vmul.f32 %v563, 0.11111111
        %v572 = vmul.f32 %v564, 0.11111111
        %v573 = vmul.f32 %v565, 0.11111111
        %v574 = vmul.f32 %v566, 0.11111111
        %v575 = vmul.f32 %v567, 0.11111111
        %v576 = vmul.f32 %v568, 0.11111111
        %v577 = vmul.f32 %v569, 0.11111111
        %v578 = vmul.f32 %v570, 0.11111111
        %v579 = vmul.f32 %v207, %v207
        %v580 = vmul.f32 %v208, %v208
        %v581 = vmul.f32 %v209, %v209
        %v582 = vmul.f32 %v210, %v210
        %v583 = vmul.f32 %v211, %v211
        %v584 = vmul.f32 %v212, %v212
        %v585 = vmul.f32 %v213, %v213
        %v586 = vmul.f32 %v214, %v214
        %595 = vrot.lane.b32.xlu0 %v579, 127
        %v596 = vpop.permute.xlu0 %595
        %597 = vrot.lane.b32.xlu0 %v580, 127
        %v598 = vpop.permute.xlu0 %597
        %599 = vrot.lane.b32.xlu0 %v581, 127
        %v600 = vpop.permute.xlu0 %599
        %601 = vrot.lane.b32.xlu0 %v582, 127
        %v602 = vpop.permute.xlu0 %601
        %603 = vrot.lane.b32.xlu0 %v583, 127
        %v604 = vpop.permute.xlu0 %603
        %605 = vrot.lane.b32.xlu0 %v584, 127
        %v606 = vpop.permute.xlu0 %605
        %607 = vrot.lane.b32.xlu0 %v585, 127
        %v608 = vpop.permute.xlu0 %607
        %609 = vrot.lane.b32.xlu0 %v586, 127
        %v610 = vpop.permute.xlu0 %609
        %619 = vrot.lane.b32.xlu0 %v579, 1
        %v620 = vpop.permute.xlu0 %619
        %621 = vrot.lane.b32.xlu0 %v580, 1
        %v622 = vpop.permute.xlu0 %621
        %623 = vrot.lane.b32.xlu0 %v581, 1
        %v624 = vpop.permute.xlu0 %623
        %625 = vrot.lane.b32.xlu0 %v582, 1
        %v626 = vpop.permute.xlu0 %625
        %627 = vrot.lane.b32.xlu0 %v583, 1
        %v628 = vpop.permute.xlu0 %627
        %629 = vrot.lane.b32.xlu0 %v584, 1
        %v630 = vpop.permute.xlu0 %629
        %631 = vrot.lane.b32.xlu0 %v585, 1
        %v632 = vpop.permute.xlu0 %631
        %633 = vrot.lane.b32.xlu0 %v586, 1
        %v634 = vpop.permute.xlu0 %633
        %v643 = vsel %vm279, %v596, %v620
        %v644 = vsel %vm279, %v598, %v622
        %v645 = vsel %vm279, %v600, %v624
        %v646 = vsel %vm279, %v602, %v626
        %v647 = vsel %vm279, %v604, %v628
        %v648 = vsel %vm279, %v606, %v630
        %v649 = vsel %vm279, %v608, %v632
        %v650 = vsel %vm279, %v610, %v634
        %v651 = vsel %vm288, %v596, %v620
        %v652 = vsel %vm288, %v598, %v622
        %v653 = vsel %vm288, %v600, %v624
        %v654 = vsel %vm288, %v602, %v626
        %v655 = vsel %vm288, %v604, %v628
        %v656 = vsel %vm288, %v606, %v630
        %v657 = vsel %vm288, %v608, %v632
        %v658 = vsel %vm288, %v610, %v634
        %v659 = vadd.f32 %v643, %v579
        %v660 = vadd.f32 %v644, %v580
        %v661 = vadd.f32 %v645, %v581
        %v662 = vadd.f32 %v646, %v582
        %v663 = vadd.f32 %v647, %v583
        %v664 = vadd.f32 %v648, %v584
        %v665 = vadd.f32 %v649, %v585
        %v666 = vadd.f32 %v650, %v586
        %v667 = vadd.f32 %v659, %v651
        %v668 = vadd.f32 %v660, %v652
        %v669 = vadd.f32 %v661, %v653
        %v670 = vadd.f32 %v662, %v654
        %v671 = vadd.f32 %v663, %v655
        %v672 = vadd.f32 %v664, %v656
        %v673 = vadd.f32 %v665, %v657
        %v674 = vadd.f32 %v666, %v658
        %v679 = vrot.slane %v667, 1
        %v680 = vrot.slane %v669, 1
        %v681 = vrot.slane %v671, 1
        %v682 = vrot.slane %v673, 1
        %v691 = vrot.slane %v667, 7
        %v692 = vrot.slane %v668, 7
        %v693 = vsel %vm329, %v691, %v692
        %v694 = vrot.slane %v669, 7
        %v695 = vrot.slane %v670, 7
        %v696 = vsel %vm329, %v694, %v695
        %v697 = vrot.slane %v671, 7
        %v698 = vrot.slane %v672, 7
        %v699 = vsel %vm329, %v697, %v698
        %v700 = vrot.slane %v673, 7
        %v701 = vrot.slane %v674, 7
        %v702 = vsel %vm329, %v700, %v701
        %v711 = vsel %vm329, %v679, %v691
        %v712 = vsel %vm329, %v680, %v694
        %v713 = vsel %vm329, %v681, %v697
        %v714 = vsel %vm329, %v682, %v700
        %v715 = vrot.slane %v668, 1
        %v716 = vsel %vm354, %v679, %v715
        %v717 = vrot.slane %v670, 1
        %v718 = vsel %vm354, %v680, %v717
        %v719 = vrot.slane %v672, 1
        %v720 = vsel %vm354, %v681, %v719
        %v721 = vrot.slane %v674, 1
        %v722 = vsel %vm354, %v682, %v721
        %v735 = vsel %vm354, %v715, %v692
        %v736 = vsel %vm354, %v717, %v695
        %v737 = vsel %vm354, %v719, %v698
        %v738 = vsel %vm354, %v721, %v701
        %v739 = vadd.f32 %v711, %v667
        %v740 = vadd.f32 %v693, %v668
        %v741 = vadd.f32 %v712, %v669
        %v742 = vadd.f32 %v696, %v670
        %v743 = vadd.f32 %v713, %v671
        %v744 = vadd.f32 %v699, %v672
        %v745 = vadd.f32 %v714, %v673
        %v746 = vadd.f32 %v702, %v674
        %v747 = vadd.f32 %v739, %v716
        %v748 = vadd.f32 %v740, %v735
        %v749 = vadd.f32 %v741, %v718
        %v750 = vadd.f32 %v742, %v736
        %v751 = vadd.f32 %v743, %v720
        %v752 = vadd.f32 %v744, %v737
        %v753 = vadd.f32 %v745, %v722
        %v754 = vadd.f32 %v746, %v738
        %v755 = vmul.f32 %v747, 0.11111111
        %v756 = vmul.f32 %v748, 0.11111111
        %v757 = vmul.f32 %v749, 0.11111111
        %v758 = vmul.f32 %v750, 0.11111111
        %v759 = vmul.f32 %v751, 0.11111111
        %v760 = vmul.f32 %v752, 0.11111111
        %v761 = vmul.f32 %v753, 0.11111111
        %v762 = vmul.f32 %v754, 0.11111111
        %v763 = vmul.f32 %v395, %v395
        %v764 = vmul.f32 %v396, %v396
        %v765 = vmul.f32 %v397, %v397
        %v766 = vmul.f32 %v398, %v398
        %v767 = vmul.f32 %v399, %v399
        %v768 = vmul.f32 %v400, %v400
        %v769 = vmul.f32 %v401, %v401
        %v770 = vmul.f32 %v402, %v402
        %v771 = vsub.f32 %v755, %v763
        %v772 = vsub.f32 %v756, %v764
        %v773 = vsub.f32 %v757, %v765
        %v774 = vsub.f32 %v758, %v766
        %v775 = vsub.f32 %v759, %v767
        %v776 = vsub.f32 %v760, %v768
        %v777 = vsub.f32 %v761, %v769
        %v778 = vsub.f32 %v762, %v770
        %v779 = vmul.f32 %v215, %v215
        %v780 = vmul.f32 %v216, %v216
        %v781 = vmul.f32 %v217, %v217
        %v782 = vmul.f32 %v218, %v218
        %v783 = vmul.f32 %v219, %v219
        %v784 = vmul.f32 %v220, %v220
        %v785 = vmul.f32 %v221, %v221
        %v786 = vmul.f32 %v222, %v222
        %795 = vrot.lane.b32.xlu0 %v779, 127
        %v796 = vpop.permute.xlu0 %795
        %797 = vrot.lane.b32.xlu0 %v780, 127
        %v798 = vpop.permute.xlu0 %797
        %799 = vrot.lane.b32.xlu0 %v781, 127
        %v800 = vpop.permute.xlu0 %799
        %801 = vrot.lane.b32.xlu0 %v782, 127
        %v802 = vpop.permute.xlu0 %801
        %803 = vrot.lane.b32.xlu0 %v783, 127
        %v804 = vpop.permute.xlu0 %803
        %805 = vrot.lane.b32.xlu0 %v784, 127
        %v806 = vpop.permute.xlu0 %805
        %807 = vrot.lane.b32.xlu0 %v785, 127
        %v808 = vpop.permute.xlu0 %807
        %809 = vrot.lane.b32.xlu0 %v786, 127
        %v810 = vpop.permute.xlu0 %809
        %819 = vrot.lane.b32.xlu0 %v779, 1
        %v820 = vpop.permute.xlu0 %819
        %821 = vrot.lane.b32.xlu0 %v780, 1
        %v822 = vpop.permute.xlu0 %821
        %823 = vrot.lane.b32.xlu0 %v781, 1
        %v824 = vpop.permute.xlu0 %823
        %825 = vrot.lane.b32.xlu0 %v782, 1
        %v826 = vpop.permute.xlu0 %825
        %827 = vrot.lane.b32.xlu0 %v783, 1
        %v828 = vpop.permute.xlu0 %827
        %829 = vrot.lane.b32.xlu0 %v784, 1
        %v830 = vpop.permute.xlu0 %829
        %831 = vrot.lane.b32.xlu0 %v785, 1
        %v832 = vpop.permute.xlu0 %831
        %833 = vrot.lane.b32.xlu0 %v786, 1
        %v834 = vpop.permute.xlu0 %833
        %v843 = vsel %vm279, %v796, %v820
        %v844 = vsel %vm279, %v798, %v822
        %v845 = vsel %vm279, %v800, %v824
        %v846 = vsel %vm279, %v802, %v826
        %v847 = vsel %vm279, %v804, %v828
        %v848 = vsel %vm279, %v806, %v830
        %v849 = vsel %vm279, %v808, %v832
        %v850 = vsel %vm279, %v810, %v834
        %v851 = vsel %vm288, %v796, %v820
        %v852 = vsel %vm288, %v798, %v822
        %v853 = vsel %vm288, %v800, %v824
        %v854 = vsel %vm288, %v802, %v826
        %v855 = vsel %vm288, %v804, %v828
        %v856 = vsel %vm288, %v806, %v830
        %v857 = vsel %vm288, %v808, %v832
        %v858 = vsel %vm288, %v810, %v834
        %v859 = vadd.f32 %v843, %v779
        %v860 = vadd.f32 %v844, %v780
        %v861 = vadd.f32 %v845, %v781
        %v862 = vadd.f32 %v846, %v782
        %v863 = vadd.f32 %v847, %v783
        %v864 = vadd.f32 %v848, %v784
        %v865 = vadd.f32 %v849, %v785
        %v866 = vadd.f32 %v850, %v786
        %v867 = vadd.f32 %v859, %v851
        %v868 = vadd.f32 %v860, %v852
        %v869 = vadd.f32 %v861, %v853
        %v870 = vadd.f32 %v862, %v854
        %v871 = vadd.f32 %v863, %v855
        %v872 = vadd.f32 %v864, %v856
        %v873 = vadd.f32 %v865, %v857
        %v874 = vadd.f32 %v866, %v858
        %v879 = vrot.slane %v867, 1
        %v880 = vrot.slane %v869, 1
        %v881 = vrot.slane %v871, 1
        %v882 = vrot.slane %v873, 1
        %v891 = vrot.slane %v867, 7
        %v892 = vrot.slane %v868, 7
        %v893 = vsel %vm329, %v891, %v892
        %v894 = vrot.slane %v869, 7
        %v895 = vrot.slane %v870, 7
        %v896 = vsel %vm329, %v894, %v895
        %v897 = vrot.slane %v871, 7
        %v898 = vrot.slane %v872, 7
        %v899 = vsel %vm329, %v897, %v898
        %v900 = vrot.slane %v873, 7
        %v901 = vrot.slane %v874, 7
        %v902 = vsel %vm329, %v900, %v901
        %v911 = vsel %vm329, %v879, %v891
        %v912 = vsel %vm329, %v880, %v894
        %v913 = vsel %vm329, %v881, %v897
        %v914 = vsel %vm329, %v882, %v900
        %v915 = vrot.slane %v868, 1
        %v916 = vsel %vm354, %v879, %v915
        %v917 = vrot.slane %v870, 1
        %v918 = vsel %vm354, %v880, %v917
        %v919 = vrot.slane %v872, 1
        %v920 = vsel %vm354, %v881, %v919
        %v921 = vrot.slane %v874, 1
        %v922 = vsel %vm354, %v882, %v921
        %v935 = vsel %vm354, %v915, %v892
        %v936 = vsel %vm354, %v917, %v895
        %v937 = vsel %vm354, %v919, %v898
        %v938 = vsel %vm354, %v921, %v901
        %v939 = vadd.f32 %v911, %v867
        %v940 = vadd.f32 %v893, %v868
        %v941 = vadd.f32 %v912, %v869
        %v942 = vadd.f32 %v896, %v870
        %v943 = vadd.f32 %v913, %v871
        %v944 = vadd.f32 %v899, %v872
        %v945 = vadd.f32 %v914, %v873
        %v946 = vadd.f32 %v902, %v874
        %v947 = vadd.f32 %v939, %v916
        %v948 = vadd.f32 %v940, %v935
        %v949 = vadd.f32 %v941, %v918
        %v950 = vadd.f32 %v942, %v936
        %v951 = vadd.f32 %v943, %v920
        %v952 = vadd.f32 %v944, %v937
        %v953 = vadd.f32 %v945, %v922
        %v954 = vadd.f32 %v946, %v938
        %v955 = vmul.f32 %v947, 0.11111111
        %v956 = vmul.f32 %v948, 0.11111111
        %v957 = vmul.f32 %v949, 0.11111111
        %v958 = vmul.f32 %v950, 0.11111111
        %v959 = vmul.f32 %v951, 0.11111111
        %v960 = vmul.f32 %v952, 0.11111111
        %v961 = vmul.f32 %v953, 0.11111111
        %v962 = vmul.f32 %v954, 0.11111111
        %v963 = vmul.f32 %v571, %v571
        %v964 = vmul.f32 %v572, %v572
        %v965 = vmul.f32 %v573, %v573
        %v966 = vmul.f32 %v574, %v574
        %v967 = vmul.f32 %v575, %v575
        %v968 = vmul.f32 %v576, %v576
        %v969 = vmul.f32 %v577, %v577
        %v970 = vmul.f32 %v578, %v578
        %v971 = vsub.f32 %v955, %v963
        %v972 = vsub.f32 %v956, %v964
        %v973 = vsub.f32 %v957, %v965
        %v974 = vsub.f32 %v958, %v966
        %v975 = vsub.f32 %v959, %v967
        %v976 = vsub.f32 %v960, %v968
        %v977 = vsub.f32 %v961, %v969
        %v978 = vsub.f32 %v962, %v970
        %v979 = vmul.f32 %v207, %v215
        %v980 = vmul.f32 %v208, %v216
        %v981 = vmul.f32 %v209, %v217
        %v982 = vmul.f32 %v210, %v218
        %v983 = vmul.f32 %v211, %v219
        %v984 = vmul.f32 %v212, %v220
        %v985 = vmul.f32 %v213, %v221
        %v986 = vmul.f32 %v214, %v222
        %995 = vrot.lane.b32.xlu0 %v979, 127
        %v996 = vpop.permute.xlu0 %995
        %997 = vrot.lane.b32.xlu0 %v980, 127
        %v998 = vpop.permute.xlu0 %997
        %999 = vrot.lane.b32.xlu0 %v981, 127
        %v1000 = vpop.permute.xlu0 %999
        %1001 = vrot.lane.b32.xlu0 %v982, 127
        %v1002 = vpop.permute.xlu0 %1001
        %1003 = vrot.lane.b32.xlu0 %v983, 127
        %v1004 = vpop.permute.xlu0 %1003
        %1005 = vrot.lane.b32.xlu0 %v984, 127
        %v1006 = vpop.permute.xlu0 %1005
        %1007 = vrot.lane.b32.xlu0 %v985, 127
        %v1008 = vpop.permute.xlu0 %1007
        %1009 = vrot.lane.b32.xlu0 %v986, 127
        %v1010 = vpop.permute.xlu0 %1009
        %1019 = vrot.lane.b32.xlu0 %v979, 1
        %v1020 = vpop.permute.xlu0 %1019
        %1021 = vrot.lane.b32.xlu0 %v980, 1
        %v1022 = vpop.permute.xlu0 %1021
        %1023 = vrot.lane.b32.xlu0 %v981, 1
        %v1024 = vpop.permute.xlu0 %1023
        %1025 = vrot.lane.b32.xlu0 %v982, 1
        %v1026 = vpop.permute.xlu0 %1025
        %1027 = vrot.lane.b32.xlu0 %v983, 1
        %v1028 = vpop.permute.xlu0 %1027
        %1029 = vrot.lane.b32.xlu0 %v984, 1
        %v1030 = vpop.permute.xlu0 %1029
        %1031 = vrot.lane.b32.xlu0 %v985, 1
        %v1032 = vpop.permute.xlu0 %1031
        %1033 = vrot.lane.b32.xlu0 %v986, 1
        %v1034 = vpop.permute.xlu0 %1033
        %v1043 = vsel %vm279, %v996, %v1020
        %v1044 = vsel %vm279, %v998, %v1022
        %v1045 = vsel %vm279, %v1000, %v1024
        %v1046 = vsel %vm279, %v1002, %v1026
        %v1047 = vsel %vm279, %v1004, %v1028
        %v1048 = vsel %vm279, %v1006, %v1030
        %v1049 = vsel %vm279, %v1008, %v1032
        %v1050 = vsel %vm279, %v1010, %v1034
        %v1051 = vsel %vm288, %v996, %v1020
        %v1052 = vsel %vm288, %v998, %v1022
        %v1053 = vsel %vm288, %v1000, %v1024
        %v1054 = vsel %vm288, %v1002, %v1026
        %v1055 = vsel %vm288, %v1004, %v1028
        %v1056 = vsel %vm288, %v1006, %v1030
        %v1057 = vsel %vm288, %v1008, %v1032
        %v1058 = vsel %vm288, %v1010, %v1034
        %v1059 = vadd.f32 %v1043, %v979
        %v1060 = vadd.f32 %v1044, %v980
        %v1061 = vadd.f32 %v1045, %v981
        %v1062 = vadd.f32 %v1046, %v982
        %v1063 = vadd.f32 %v1047, %v983
        %v1064 = vadd.f32 %v1048, %v984
        %v1065 = vadd.f32 %v1049, %v985
        %v1066 = vadd.f32 %v1050, %v986
        %v1067 = vadd.f32 %v1059, %v1051
        %v1068 = vadd.f32 %v1060, %v1052
        %v1069 = vadd.f32 %v1061, %v1053
        %v1070 = vadd.f32 %v1062, %v1054
        %v1071 = vadd.f32 %v1063, %v1055
        %v1072 = vadd.f32 %v1064, %v1056
        %v1073 = vadd.f32 %v1065, %v1057
        %v1074 = vadd.f32 %v1066, %v1058
        %v1079 = vrot.slane %v1067, 1
        %v1080 = vrot.slane %v1069, 1
        %v1081 = vrot.slane %v1071, 1
        %v1082 = vrot.slane %v1073, 1
        %v1091 = vrot.slane %v1067, 7
        %v1092 = vrot.slane %v1068, 7
        %v1093 = vsel %vm329, %v1091, %v1092
        %v1094 = vrot.slane %v1069, 7
        %v1095 = vrot.slane %v1070, 7
        %v1096 = vsel %vm329, %v1094, %v1095
        %v1097 = vrot.slane %v1071, 7
        %v1098 = vrot.slane %v1072, 7
        %v1099 = vsel %vm329, %v1097, %v1098
        %v1100 = vrot.slane %v1073, 7
        %v1101 = vrot.slane %v1074, 7
        %v1102 = vsel %vm329, %v1100, %v1101
        %v1111 = vsel %vm329, %v1079, %v1091
        %v1112 = vsel %vm329, %v1080, %v1094
        %v1113 = vsel %vm329, %v1081, %v1097
        %v1114 = vsel %vm329, %v1082, %v1100
        %v1115 = vrot.slane %v1068, 1
        %v1116 = vsel %vm354, %v1079, %v1115
        %v1117 = vrot.slane %v1070, 1
        %v1118 = vsel %vm354, %v1080, %v1117
        %v1119 = vrot.slane %v1072, 1
        %v1120 = vsel %vm354, %v1081, %v1119
        %v1121 = vrot.slane %v1074, 1
        %v1122 = vsel %vm354, %v1082, %v1121
        %v1135 = vsel %vm354, %v1115, %v1092
        %v1136 = vsel %vm354, %v1117, %v1095
        %v1137 = vsel %vm354, %v1119, %v1098
        %v1138 = vsel %vm354, %v1121, %v1101
        %v1139 = vadd.f32 %v1111, %v1067
        %v1140 = vadd.f32 %v1093, %v1068
        %v1141 = vadd.f32 %v1112, %v1069
        %v1142 = vadd.f32 %v1096, %v1070
        %v1143 = vadd.f32 %v1113, %v1071
        %v1144 = vadd.f32 %v1099, %v1072
        %v1145 = vadd.f32 %v1114, %v1073
        %v1146 = vadd.f32 %v1102, %v1074
        %v1147 = vadd.f32 %v1139, %v1116
        %v1148 = vadd.f32 %v1140, %v1135
        %v1149 = vadd.f32 %v1141, %v1118
        %v1150 = vadd.f32 %v1142, %v1136
        %v1151 = vadd.f32 %v1143, %v1120
        %v1152 = vadd.f32 %v1144, %v1137
        %v1153 = vadd.f32 %v1145, %v1122
        %v1154 = vadd.f32 %v1146, %v1138
        %v1155 = vmul.f32 %v1147, 0.11111111
        %v1156 = vmul.f32 %v1148, 0.11111111
        %v1157 = vmul.f32 %v1149, 0.11111111
        %v1158 = vmul.f32 %v1150, 0.11111111
        %v1159 = vmul.f32 %v1151, 0.11111111
        %v1160 = vmul.f32 %v1152, 0.11111111
        %v1161 = vmul.f32 %v1153, 0.11111111
        %v1162 = vmul.f32 %v1154, 0.11111111
        %v1163 = vmul.f32 %v395, %v571
        %v1164 = vmul.f32 %v396, %v572
        %v1165 = vmul.f32 %v397, %v573
        %v1166 = vmul.f32 %v398, %v574
        %v1167 = vmul.f32 %v399, %v575
        %v1168 = vmul.f32 %v400, %v576
        %v1169 = vmul.f32 %v401, %v577
        %v1170 = vmul.f32 %v402, %v578
        %v1171 = vsub.f32 %v1155, %v1163
        %v1172 = vsub.f32 %v1156, %v1164
        %v1173 = vsub.f32 %v1157, %v1165
        %v1174 = vsub.f32 %v1158, %v1166
        %v1175 = vsub.f32 %v1159, %v1167
        %v1176 = vsub.f32 %v1160, %v1168
        %v1177 = vsub.f32 %v1161, %v1169
        %v1178 = vsub.f32 %v1162, %v1170
        %v1179 = vmul.f32 %v395, 2.0
        %v1180 = vmul.f32 %v396, 2.0
        %v1181 = vmul.f32 %v397, 2.0
        %v1182 = vmul.f32 %v398, 2.0
        %v1183 = vmul.f32 %v399, 2.0
        %v1184 = vmul.f32 %v400, 2.0
        %v1185 = vmul.f32 %v401, 2.0
        %v1186 = vmul.f32 %v402, 2.0
        %v1187 = vmul.f32 %v1179, %v571
        %v1188 = vmul.f32 %v1180, %v572
        %v1189 = vmul.f32 %v1181, %v573
        %v1190 = vmul.f32 %v1182, %v574
        %v1191 = vmul.f32 %v1183, %v575
        %v1192 = vmul.f32 %v1184, %v576
        %v1193 = vmul.f32 %v1185, %v577
        %v1194 = vmul.f32 %v1186, %v578
        %v1195 = vadd.f32 %v1187, 0.0001
        %v1196 = vadd.f32 %v1188, 0.0001
        %v1197 = vadd.f32 %v1189, 0.0001
        %v1198 = vadd.f32 %v1190, 0.0001
        %v1199 = vadd.f32 %v1191, 0.0001
        %v1200 = vadd.f32 %v1192, 0.0001
        %v1201 = vadd.f32 %v1193, 0.0001
        %v1202 = vadd.f32 %v1194, 0.0001
        %v1203 = vmul.f32 %v1171, 2.0
        %v1204 = vmul.f32 %v1172, 2.0
        %v1205 = vmul.f32 %v1173, 2.0
        %v1206 = vmul.f32 %v1174, 2.0
        %v1207 = vmul.f32 %v1175, 2.0
        %v1208 = vmul.f32 %v1176, 2.0
        %v1209 = vmul.f32 %v1177, 2.0
        %v1210 = vmul.f32 %v1178, 2.0
        %v1211 = vadd.f32 %v1203, 0.0009
        %v1212 = vadd.f32 %v1204, 0.0009
        %v1213 = vadd.f32 %v1205, 0.0009
        %v1214 = vadd.f32 %v1206, 0.0009
        %v1215 = vadd.f32 %v1207, 0.0009
        %v1216 = vadd.f32 %v1208, 0.0009
        %v1217 = vadd.f32 %v1209, 0.0009
        %v1218 = vadd.f32 %v1210, 0.0009
        %v1219 = vmul.f32 %v1195, %v1211
        %v1220 = vmul.f32 %v1196, %v1212
        %v1221 = vmul.f32 %v1197, %v1213
        %v1222 = vmul.f32 %v1198, %v1214
        %v1223 = vmul.f32 %v1199, %v1215
        %v1224 = vmul.f32 %v1200, %v1216
        %v1225 = vmul.f32 %v1201, %v1217
        %v1226 = vmul.f32 %v1202, %v1218
        %v1227 = vadd.f32 %v763, %v963
        %v1228 = vadd.f32 %v764, %v964
        %v1229 = vadd.f32 %v765, %v965
        %v1230 = vadd.f32 %v766, %v966
        %v1231 = vadd.f32 %v767, %v967
        %v1232 = vadd.f32 %v768, %v968
        %v1233 = vadd.f32 %v769, %v969
        %v1234 = vadd.f32 %v770, %v970
        %v1235 = vadd.f32 %v1227, 0.0001
        %v1236 = vadd.f32 %v1228, 0.0001
        %v1237 = vadd.f32 %v1229, 0.0001
        %v1238 = vadd.f32 %v1230, 0.0001
        %v1239 = vadd.f32 %v1231, 0.0001
        %v1240 = vadd.f32 %v1232, 0.0001
        %v1241 = vadd.f32 %v1233, 0.0001
        %v1242 = vadd.f32 %v1234, 0.0001
        %v1243 = vadd.f32 %v771, %v971
        %v1244 = vadd.f32 %v772, %v972
        %v1245 = vadd.f32 %v773, %v973
        %v1246 = vadd.f32 %v774, %v974
        %v1247 = vadd.f32 %v775, %v975
        %v1248 = vadd.f32 %v776, %v976
        %v1249 = vadd.f32 %v777, %v977
        %v1250 = vadd.f32 %v778, %v978
        %v1251 = vadd.f32 %v1243, 0.0009
        %v1252 = vadd.f32 %v1244, 0.0009
        %v1253 = vadd.f32 %v1245, 0.0009
        %v1254 = vadd.f32 %v1246, 0.0009
        %v1255 = vadd.f32 %v1247, 0.0009
        %v1256 = vadd.f32 %v1248, 0.0009
        %v1257 = vadd.f32 %v1249, 0.0009
        %v1258 = vadd.f32 %v1250, 0.0009
        %v1259 = vmul.f32 %v1235, %v1251
        %v1260 = vmul.f32 %v1236, %v1252
        %v1261 = vmul.f32 %v1237, %v1253
        %v1262 = vmul.f32 %v1238, %v1254
        %v1263 = vmul.f32 %v1239, %v1255
        %v1264 = vmul.f32 %v1240, %v1256
        %v1265 = vmul.f32 %v1241, %v1257
        %v1266 = vmul.f32 %v1242, %v1258
        %v1267 = vrcp.pop %v1259
        %v1268 = vrcp.pop %v1260
        %v1269 = vrcp.pop %v1261
        %v1270 = vrcp.pop %v1262
        %v1271 = vrcp.pop %v1263
        %v1272 = vrcp.pop %v1264
        %v1273 = vrcp.pop %v1265
        %v1274 = vrcp.pop %v1266
        %v1275 = vmul.f32 %v1219, %v1267
        %v1276 = vmul.f32 %v1220, %v1268
        %v1277 = vmul.f32 %v1221, %v1269
        %v1278 = vmul.f32 %v1222, %v1270
        %v1279 = vmul.f32 %v1223, %v1271
        %v1280 = vmul.f32 %v1224, %v1272
        %v1281 = vmul.f32 %v1225, %v1273
        %v1282 = vmul.f32 %v1226, %v1274
        %v1283 = vsub.f32 1.0, %v1275
        %v1284 = vsub.f32 1.0, %v1276
        %v1285 = vsub.f32 1.0, %v1277
        %v1286 = vsub.f32 1.0, %v1278
        %v1287 = vsub.f32 1.0, %v1279
        %v1288 = vsub.f32 1.0, %v1280
        %v1289 = vsub.f32 1.0, %v1281
        %v1290 = vsub.f32 1.0, %v1282
        %v1291 = vmul.f32 %v1283, 0.5
        %v1292 = vmul.f32 %v1284, 0.5
        %v1293 = vmul.f32 %v1285, 0.5
        %v1294 = vmul.f32 %v1286, 0.5
        %v1295 = vmul.f32 %v1287, 0.5
        %v1296 = vmul.f32 %v1288, 0.5
        %v1297 = vmul.f32 %v1289, 0.5
        %v1298 = vmul.f32 %v1290, 0.5
        %v1299 = vmax.f32 %v1291, 0.0
        %v1300 = vmax.f32 %v1292, 0.0
        %v1301 = vmax.f32 %v1293, 0.0
        %v1302 = vmax.f32 %v1294, 0.0
        %v1303 = vmax.f32 %v1295, 0.0
        %v1304 = vmax.f32 %v1296, 0.0
        %v1305 = vmax.f32 %v1297, 0.0
        %v1306 = vmax.f32 %v1298, 0.0
        %v1307 = vmin.f32 %v1299, 1.0
        %v1308 = vmin.f32 %v1300, 1.0
        %v1309 = vmin.f32 %v1301, 1.0
        %v1310 = vmin.f32 %v1302, 1.0
        %v1311 = vmin.f32 %v1303, 1.0
        %v1312 = vmin.f32 %v1304, 1.0
        %v1313 = vmin.f32 %v1305, 1.0
        %v1314 = vmin.f32 %v1306, 1.0
        %vm1315 = vcmask 130048
        %1316 = vst.msk [vmem:[%s203] sm:$0xff] %vm1315, %v1307
        %1317 = vst.msk [vmem:[%s203 + $0x8] sm:$0xff] %vm1315, %v1308
        %1318 = vst.msk [vmem:[%s203 + $0x10] sm:$0xff] %vm1315, %v1309
        %1319 = vst.msk [vmem:[%s203 + $0x18] sm:$0xff] %vm1315, %v1310
        %1320 = vst.msk [vmem:[%s203 + $0x20] sm:$0xff] %vm1315, %v1311
        %1321 = vst.msk [vmem:[%s203 + $0x28] sm:$0xff] %vm1315, %v1312
        %1322 = vst.msk [vmem:[%s203 + $0x30] sm:$0xff] %vm1315, %v1313
        %1323 = vst.msk [vmem:[%s203 + $0x38] sm:$0xff] %vm1315, %v1314
        %s1324 = sand.u32 %s82, 1
        %s1325 = scalar_lea.sflag [#allocation4], %s1324
        %s1326 = sand.u32 %s82, 1
        %s1327 = smul.addr %s1326, 64
        %s1328 = scalar_lea.vmem [#allocation7], %s1327
        // Predicated region
        $region37: #{tpu_custom_call.1} parent=27 // pred_check
          %p1329 = pneg %p92
        $region38: #{tpu_custom_call.1} parent=27 // pred_check_branch
          %1331 = sbr.rel (%p1329) target = $region40
        $region39: #{tpu_custom_call.1} parent=27 // pred_region
          %s1332 = smul.u32 4, %s22
          %s1334 = ssub.s32 1024, 1024
          %1335 = vsyncadd %s1325, %s1334
          %s1336 = smul.addr %s1332, 2
          %s1337 = smul.addr %s1336, 128
          %s1338 = scalar_lea.hbm %s2, %s1337
          %s1339 = sshll.u32 %s1328, 4
          %s1340 = int_to_ptr.vmem [resolvable:$true] %s1339
          %1345 = dma.vmem_to_hbm [thread:$0]  %s1340, 1024, %s1338, %s1325, 128, 128, 8
        $region40: #{tpu_custom_call.1} parent=27 // pred_fallthru
          _
      $region28: #{tpu_custom_call.1} parent=5 // pred_fallthru
        _
      %p1346 = scmp.le.s32.totalorder 2, %s17
      // Predicated region
      $region41: #{tpu_custom_call.1} parent=5 // pred_check
        %p1347 = pneg %p1346
      $region42: #{tpu_custom_call.1} parent=5 // pred_check_branch
        %1349 = sbr.rel (%p1347) target = $region44
      $region43: #{tpu_custom_call.1} parent=5 // pred_region
        %s1350 = ssub.s32 %s17, 2
        // Predicated region
        $region45: #{tpu_custom_call.1} parent=43 // pred_check
          %p1351 = pneg %p98
        $region46: #{tpu_custom_call.1} parent=43 // pred_check_branch
          %1353 = sbr.rel (%p1351) target = $region48
        $region47: #{tpu_custom_call.1} parent=43 // pred_region
          %s1354 = sand.u32 %s83, 1
          %s1355 = scalar_lea.sflag [#allocation4], %s1354
          %s1356 = sand.u32 %s83, 1
          %s1357 = smul.addr %s1356, 64
          %s1358 = scalar_lea.vmem [#allocation7], %s1357
          %1359 = dma.done %s1355, 1024
        $region48: #{tpu_custom_call.1} parent=43 // pred_fallthru
          _
      $region44: #{tpu_custom_call.1} parent=5 // pred_fallthru
        _
    $region6: #{tpu_custom_call.1} parent=1 // loop_footer
      %s21 = sadd.s32 1, %s17
    $region7: #{tpu_custom_call.1} parent=1 // loop_footer_branch
      %16 = sbr.rel target = $region3
    $region8: #{tpu_custom_call.1} parent=1 // loop_exit
      _
    %1360 = vsyncpa [#allocation3], 1
    %s1361 = scalar_lea.sflag [#allocation3], 1
    %1362 = vsyncpa %s1361, 1
    %1363 = vsyncpa [#allocation6], 1
    %s1364 = scalar_lea.sflag [#allocation6], 1
    %1365 = vsyncpa %s1364, 1
    %1366 = vsyncpa [#allocation4], 1
    %s1367 = scalar_lea.sflag [#allocation4], 1
    %1368 = vsyncpa %s1367, 1

</llo_original>
